<compile_context>
chip_gen: v5e
topology: v5e:2x2
jax: 0.10.0
libtpu: 0.0.40
codegen_flags: <defaults>
</compile_context>

<pallas_src>
import functools

import jax
import jax.numpy as jnp
from jax.experimental import pallas as pl
from jax.experimental.pallas import tpu as pltpu

ALPHA = 0.17
NUM_CLASSES = 32
IGNORE_INDEX = -100
MSE_CLAMP_MAX = 160.0  # per the reference module (note: the MS-TCN paper uses 16)


def _cemse_kernel(logits_ref, targets_ref, ce_ref, cnt_ref, mse_ref, carry_ref,
                  *, t_total, t_blk):
    """One (batch element, time tile) step.  logits_ref: [1, C, T_BLK], targets_ref: [1, 1, T_BLK]."""
    t_idx = pl.program_id(1)

    @pl.when(t_idx == 0)
    def _init():
        ce_ref[...] = jnp.zeros_like(ce_ref)
        cnt_ref[...] = jnp.zeros_like(cnt_ref)
        mse_ref[...] = jnp.zeros_like(mse_ref)
        carry_ref[...] = jnp.zeros_like(carry_ref)

    x = logits_ref[0].astype(jnp.float32)          # [C, T_BLK]  (classes on sublanes, time on lanes)
    tgt = targets_ref[0]                           # [1, T_BLK] int32
    c_dim = x.shape[0]

    # log-softmax over the class (sublane) axis.
    m = jnp.max(x, axis=0, keepdims=True)
    shifted = x - m
    lse = jnp.log(jnp.sum(jnp.exp(shifted), axis=0, keepdims=True))
    logp = shifted - lse                           # [C, T_BLK]

    # ----- CrossEntropy with ignore_index (partial sums; mean taken in the wrapper) -----
    valid = tgt != IGNORE_INDEX                    # [1, T_BLK]  (padded frames carry IGNORE_INDEX)
    safe_tgt = jnp.where(valid, tgt, 0)
    class_ids = jax.lax.broadcasted_iota(jnp.int32, (c_dim, t_blk), 0)
    picked = jnp.sum(jnp.where(class_ids == safe_tgt, logp, 0.0),
                     axis=0, keepdims=True)        # [1, T_BLK] = logp at target class
    ce_ref[0] += jnp.sum(jnp.where(valid, -picked, 0.0), axis=1, keepdims=True)   # (1,1)
    cnt_ref[0] += jnp.sum(valid.astype(jnp.float32), axis=1, keepdims=True)        # (1,1)

    # ----- Smoothing MSE between consecutive frames (lanes), with cross-block carry -----
    if t_blk > 1:
        lane = jax.lax.broadcasted_iota(jnp.int32, (1, t_blk), 1)
        if t_blk % 128 == 0:
            prev = pltpu.roll(logp, shift=1, axis=1)          # col t holds logp[:, t-1] (XLU, cheap)
        else:
            # Single full-T block narrower than 128 lanes: tiny shifted copy is fine.
            prev = jnp.concatenate([logp[:, :1], logp[:, : t_blk - 1]], axis=1)
        prev = jnp.where(lane == 0, carry_ref[...], prev)     # splice previous block's last frame
        d = logp - prev
        sq = jnp.minimum(d * d, MSE_CLAMP_MAX)                # d*d >= 0 -> single-sided clamp
        g_t = t_idx * t_blk + lane                            # global frame index of "current" frame
        mse_mask = jnp.logical_and(g_t >= 1, g_t < t_total)   # drop t=0 and padded frames
        mse_ref[0] += jnp.sum(jnp.where(mse_mask, sq, 0.0), axis=(0, 1), keepdims=True)
        carry_ref[...] = logp[:, t_blk - 1:]                  # carry last frame to the next block
    # (t_blk == 1 only when T == 1: empty smoothing term, handled by the wrapper's denominator.)


def ce_plus_mse(logits, targets, *, alpha=ALPHA, t_block=None):
    """logits: [B, T, C] float (f32 or bf16); targets: [B, T] int. Returns dict of scalar losses."""
    assert logits.ndim == 3 and targets.ndim == 2
    B, T, C = logits.shape
    assert targets.shape == (B, T)

    # Time tile: time lives on lanes, so tiles (when tiling) must be multiples of 128;
    # a single full-T block is exempt from the (8,128) rule.
    if t_block is None:
        t_block = T if T <= 4096 else 2048
    if t_block >= T:
        t_block = T
    else:
        assert t_block % 128 == 0, "time block must be a multiple of 128 when tiling over T"
    t_pad = pl.cdiv(T, t_block) * t_block
    n_t = t_pad // t_block

    # Lane-dense layout: classes on sublanes, time on lanes.
    logits_bct = jnp.transpose(logits, (0, 2, 1))            # [B, C, T]
    targets_b1t = targets.astype(jnp.int32)[:, None, :]      # [B, 1, T]
    if t_pad != T:
        logits_bct = jnp.pad(logits_bct, ((0, 0), (0, 0), (0, t_pad - T)))
        targets_b1t = jnp.pad(targets_b1t, ((0, 0), (0, 0), (0, t_pad - T)),
                              constant_values=IGNORE_INDEX)

    kernel = functools.partial(_cemse_kernel, t_total=T, t_blk=t_block)
    out_shape = tuple(jax.ShapeDtypeStruct((B, 1, 1), jnp.float32) for _ in range(3))
    acc_spec = pl.BlockSpec((1, 1, 1), lambda b, t: (b, 0, 0))   # resident across the time axis

    itemsize = jnp.dtype(logits.dtype).itemsize
    cost = pl.CostEstimate(
        flops=int(14 * B * t_pad * C),
        transcendentals=int(B * t_pad * (C + 1)),
        bytes_accessed=int(B * t_pad * C * itemsize + B * t_pad * 4 + 3 * B * 4),
    )

    ce_sum, cnt, mse_sum = pl.pallas_call(
        kernel,
        out_shape=out_shape,
        grid_spec=pltpu.PrefetchScalarGridSpec(
            num_scalar_prefetch=0,
            grid=(B, n_t),
            in_specs=[
                pl.BlockSpec((1, C, t_block), lambda b, t: (b, 0, t)),
                pl.BlockSpec((1, 1, t_block), lambda b, t: (b, 0, t)),
            ],
            out_specs=(acc_spec, acc_spec, acc_spec),
            scratch_shapes=[pltpu.VMEM((C, 1), jnp.float32)],   # previous block's last-frame logp
        ),
        compiler_params=pltpu.CompilerParams(
            dimension_semantics=("parallel", "arbitrary"),
            vmem_limit_bytes=32 * 1024 * 1024,
        ),
        cost_estimate=cost,
    )(logits_bct, targets_b1t)

    ce_sum = jnp.sum(ce_sum)
    cnt = jnp.sum(cnt)
    mse_sum = jnp.sum(mse_sum)
    loss_ce = ce_sum / cnt                                    # NaN if every target is ignored (matches torch)
    loss_mse = mse_sum / jnp.float32(B * (T - 1) * C)         # global denominator (NaN if T==1, like torch)
    loss_total = loss_ce + alpha * loss_mse
    return {"loss_ce": loss_ce, "loss_mse": loss_mse, "loss_total": loss_total}


def ce_plus_mse_ref(logits, targets, *, alpha=ALPHA):
    """Pure-JAX reference reproducing the PyTorch forward semantics."""
    logits = logits.astype(jnp.float32)
    logp = jax.nn.log_softmax(logits, axis=-1)
    valid = targets != IGNORE_INDEX
    safe_tgt = jnp.where(valid, targets, 0)
    picked = jnp.take_along_axis(logp, safe_tgt[:, :, None], axis=-1)[..., 0]
    loss_ce = jnp.sum(jnp.where(valid, -picked, 0.0)) / jnp.sum(valid).astype(jnp.float32)
    d = logp[:, 1:, :] - logp[:, :-1, :]
    loss_mse = jnp.mean(jnp.clip(d * d, 0.0, MSE_CLAMP_MAX))
    return {"loss_ce": loss_ce, "loss_mse": loss_mse,
            "loss_total": loss_ce + alpha * loss_mse}


if __name__ == "__main__":
    key = jax.random.PRNGKey(0)
    k1, k2, k3, k4 = jax.random.split(key, 4)

    # Case 1: small shapes, single time block (B=2, T=16, C=32), exercises ignore_index.
    B, T, C = 2, 16, NUM_CLASSES
    logits = jax.random.normal(k1, (B, T, C), dtype=jnp.float32)
    targets = jax.random.randint(k2, (B, T), 0, C, dtype=jnp.int32)
    targets = targets.at[0, 3].set(IGNORE_INDEX)

    out = ce_plus_mse(logits, targets)
    out = jax.tree_util.tree_map(jax.block_until_ready, out)
    ref = ce_plus_mse_ref(logits, targets)
    for name in ("loss_ce", "loss_mse", "loss_total"):
        assert jnp.allclose(out[name], ref[name], atol=1e-5, rtol=1e-4), (
            name, out[name], ref[name])

    # Case 2: exercises time tiling, the cross-block carry, and ragged-T padding/masking.
    B2, T2 = 2, 200
    logits2 = jax.random.normal(k3, (B2, T2, C), dtype=jnp.float32)
    targets2 = jax.random.randint(k4, (B2, T2), 0, C, dtype=jnp.int32)
    targets2 = targets2.at[1, 7].set(IGNORE_INDEX)

    out2 = ce_plus_mse(logits2, targets2, t_block=128)
    out2 = jax.tree_util.tree_map(jax.block_until_ready, out2)
    ref2 = ce_plus_mse_ref(logits2, targets2)
    for name in ("loss_ce", "loss_mse", "loss_total"):
        assert jnp.allclose(out2[name], ref2[name], atol=1e-5, rtol=1e-4), (
            name, out2[name], ref2[name])

    print("KERNEL_OK")
</pallas_src>

<mosaic_0001>
module attributes {stable_mosaic.version = 11 : i64} {
  func.func @_cemse_kernel(%arg0: i32, %arg1: i32, %arg2: memref<1x32x16xf32, #tpu.memory_space<vmem>>, %arg3: memref<1x1x16xi32, #tpu.memory_space<vmem>>, %arg4: memref<1x1x1xf32, #tpu.memory_space<vmem>>, %arg5: memref<1x1x1xf32, #tpu.memory_space<vmem>>, %arg6: memref<1x1x1xf32, #tpu.memory_space<vmem>>, %arg7: memref<32x1xf32, #tpu.memory_space<vmem>>) attributes {dimension_semantics = [#tpu.dimension_semantics<parallel>, #tpu.dimension_semantics<arbitrary>], iteration_bounds = array<i64: 2, 1>, scalar_prefetch = 0 : i64, scratch_operands = 1 : i64, tpu.core_type = #tpu.core_type<tc>, window_params = [{transform_indices = @transform_0, window_bounds = array<i64: 1, 32, 16>}, {transform_indices = @transform_1, window_bounds = array<i64: 1, 1, 16>}, {transform_indices = @transform_2, window_bounds = array<i64: 1, 1, 1>}, {transform_indices = @transform_3, window_bounds = array<i64: 1, 1, 1>}, {transform_indices = @transform_4, window_bounds = array<i64: 1, 1, 1>}]} {
    %c0_i32 = arith.constant 0 : i32
    %0 = arith.cmpi eq, %arg1, %c0_i32 : i32
    %1 = arith.extui %0 : i1 to i32
    %c0_i32_0 = arith.constant 0 : i32
    %2 = arith.cmpi ne, %1, %c0_i32_0 : i32
    scf.if %2 {
      %cst_41 = arith.constant 0.000000e+00 : f32
      %91 = vector.broadcast %cst_41 : f32 to vector<1x1x1xf32>
      %c0_42 = arith.constant 0 : index
      %c0_43 = arith.constant 0 : index
      %c0_44 = arith.constant 0 : index
      %92 = vector.load %arg4[%c0_42, %c0_43, %c0_44] : memref<1x1x1xf32, #tpu.memory_space<vmem>>, vector<1x1x1xf32>
      tpu.vector_store %arg4[%c0_42, %c0_43, %c0_44], %91 {strides = array<i32>} : memref<1x1x1xf32, #tpu.memory_space<vmem>>, vector<1x1x1xf32>,
      %cst_45 = arith.constant 0.000000e+00 : f32
      %93 = vector.broadcast %cst_45 : f32 to vector<1x1x1xf32>
      %c0_46 = arith.constant 0 : index
      %c0_47 = arith.constant 0 : index
      %c0_48 = arith.constant 0 : index
      %94 = vector.load %arg5[%c0_46, %c0_47, %c0_48] : memref<1x1x1xf32, #tpu.memory_space<vmem>>, vector<1x1x1xf32>
      tpu.vector_store %arg5[%c0_46, %c0_47, %c0_48], %93 {strides = array<i32>} : memref<1x1x1xf32, #tpu.memory_space<vmem>>, vector<1x1x1xf32>,
      %cst_49 = arith.constant 0.000000e+00 : f32
      %95 = vector.broadcast %cst_49 : f32 to vector<1x1x1xf32>
      %c0_50 = arith.constant 0 : index
      %c0_51 = arith.constant 0 : index
      %c0_52 = arith.constant 0 : index
      %96 = vector.load %arg6[%c0_50, %c0_51, %c0_52] : memref<1x1x1xf32, #tpu.memory_space<vmem>>, vector<1x1x1xf32>
      tpu.vector_store %arg6[%c0_50, %c0_51, %c0_52], %95 {strides = array<i32>} : memref<1x1x1xf32, #tpu.memory_space<vmem>>, vector<1x1x1xf32>,
      %cst_53 = arith.constant 0.000000e+00 : f32
      %97 = vector.broadcast %cst_53 : f32 to vector<32x1xf32>
      %c0_54 = arith.constant 0 : index
      %c0_55 = arith.constant 0 : index
      %98 = vector.load %arg7[%c0_54, %c0_55] : memref<32x1xf32, #tpu.memory_space<vmem>>, vector<32x1xf32>
      tpu.vector_store %arg7[%c0_54, %c0_55], %97 {strides = array<i32>} : memref<32x1xf32, #tpu.memory_space<vmem>>, vector<32x1xf32>,
    } else {
    }
    %c0 = arith.constant 0 : index
    %c0_1 = arith.constant 0 : index
    %c0_2 = arith.constant 0 : index
    %3 = vector.load %arg2[%c0, %c0_1, %c0_2] : memref<1x32x16xf32, #tpu.memory_space<vmem>>, vector<1x32x16xf32>
    %4 = vector.shape_cast %3 : vector<1x32x16xf32> to vector<32x16xf32>
    %c0_3 = arith.constant 0 : index
    %c0_4 = arith.constant 0 : index
    %c0_5 = arith.constant 0 : index
    %5 = vector.load %arg3[%c0_3, %c0_4, %c0_5] : memref<1x1x16xi32, #tpu.memory_space<vmem>>, vector<1x1x16xi32>
    %6 = vector.shape_cast %5 : vector<1x1x16xi32> to vector<1x16xi32>
    %cst = arith.constant dense<0xFF800000> : vector<16xf32>
    %7 = vector.multi_reduction <maximumf>, %4, %cst [0] : vector<32x16xf32> to vector<16xf32>
    %8 = vector.shape_cast %7 : vector<16xf32> to vector<1x16xf32>
    %9 = vector.broadcast %8 : vector<1x16xf32> to vector<32x16xf32>
    %10 = arith.subf %4, %9 : vector<32x16xf32>
    %11 = math.exp %10 : vector<32x16xf32>
    %cst_6 = arith.constant dense<0.000000e+00> : vector<16xf32>
    %12 = vector.multi_reduction <add>, %11, %cst_6 [0] : vector<32x16xf32> to vector<16xf32>
    %13 = vector.shape_cast %12 : vector<16xf32> to vector<1x16xf32>
    %14 = math.log %13 : vector<1x16xf32>
    %15 = vector.broadcast %14 : vector<1x16xf32> to vector<32x16xf32>
    %16 = arith.subf %10, %15 : vector<32x16xf32>
    %c-100_i32 = arith.constant -100 : i32
    %17 = vector.broadcast %c-100_i32 : i32 to vector<1x16xi32>
    %18 = arith.cmpi ne, %6, %17 : vector<1x16xi32>
    %c0_i32_7 = arith.constant 0 : i32
    %19 = vector.broadcast %c0_i32_7 : i32 to vector<1x16xi32>
    %20 = arith.select %18, %6, %19 : vector<1x16xi1>, vector<1x16xi32>
    %21 = tpu.iota {dimensions = array<i32: 0>} : vector<32x16xi32>
    %22 = vector.broadcast %20 : vector<1x16xi32> to vector<32x16xi32>
    %23 = arith.cmpi eq, %21, %22 : vector<32x16xi32>
    %cst_8 = arith.constant 0.000000e+00 : f32
    %24 = vector.broadcast %cst_8 : f32 to vector<32x16xf32>
    %25 = arith.select %23, %16, %24 : vector<32x16xi1>, vector<32x16xf32>
    %cst_9 = arith.constant dense<0.000000e+00> : vector<16xf32>
    %26 = vector.multi_reduction <add>, %25, %cst_9 [0] : vector<32x16xf32> to vector<16xf32>
    %27 = vector.shape_cast %26 : vector<16xf32> to vector<1x16xf32>
    %c0_10 = arith.constant 0 : index
    %c0_11 = arith.constant 0 : index
    %c0_12 = arith.constant 0 : index
    %28 = vector.load %arg4[%c0_10, %c0_11, %c0_12] : memref<1x1x1xf32, #tpu.memory_space<vmem>>, vector<1x1x1xf32>
    %29 = vector.shape_cast %28 : vector<1x1x1xf32> to vector<1x1xf32>
    %cst_13 = arith.constant 0.000000e+00 : f32
    %30 = vector.broadcast %cst_13 : f32 to vector<1x16xf32>
    %31 = arith.subf %30, %27 : vector<1x16xf32>
    %cst_14 = arith.constant 0.000000e+00 : f32
    %32 = vector.broadcast %cst_14 : f32 to vector<1x16xf32>
    %33 = arith.select %18, %31, %32 : vector<1x16xi1>, vector<1x16xf32>
    %cst_15 = arith.constant dense<0.000000e+00> : vector<1xf32>
    %34 = vector.multi_reduction <add>, %33, %cst_15 [1] : vector<1x16xf32> to vector<1xf32>
    %35 = vector.shape_cast %34 : vector<1xf32> to vector<1x1xf32>
    %36 = arith.addf %29, %35 : vector<1x1xf32>
    %c0_16 = arith.constant 0 : index
    %c0_17 = arith.constant 0 : index
    %c0_18 = arith.constant 0 : index
    %37 = vector.load %arg4[%c0_16, %c0_17, %c0_18] : memref<1x1x1xf32, #tpu.memory_space<vmem>>, vector<1x1x1xf32>
    %38 = vector.shape_cast %37 : vector<1x1x1xf32> to vector<1x1xf32>
    %39 = vector.shape_cast %36 : vector<1x1xf32> to vector<1x1x1xf32>
    tpu.vector_store %arg4[%c0_16, %c0_17, %c0_18], %39 {strides = array<i32>} : memref<1x1x1xf32, #tpu.memory_space<vmem>>, vector<1x1x1xf32>,
    %c0_19 = arith.constant 0 : index
    %c0_20 = arith.constant 0 : index
    %c0_21 = arith.constant 0 : index
    %40 = vector.load %arg5[%c0_19, %c0_20, %c0_21] : memref<1x1x1xf32, #tpu.memory_space<vmem>>, vector<1x1x1xf32>
    %41 = vector.shape_cast %40 : vector<1x1x1xf32> to vector<1x1xf32>
    %42 = arith.extui %18 : vector<1x16xi1> to vector<1x16xi32>
    %43 = arith.sitofp %42 : vector<1x16xi32> to vector<1x16xf32>
    %cst_22 = arith.constant dense<0.000000e+00> : vector<1xf32>
    %44 = vector.multi_reduction <add>, %43, %cst_22 [1] : vector<1x16xf32> to vector<1xf32>
    %45 = vector.shape_cast %44 : vector<1xf32> to vector<1x1xf32>
    %46 = arith.addf %41, %45 : vector<1x1xf32>
    %c0_23 = arith.constant 0 : index
    %c0_24 = arith.constant 0 : index
    %c0_25 = arith.constant 0 : index
    %47 = vector.load %arg5[%c0_23, %c0_24, %c0_25] : memref<1x1x1xf32, #tpu.memory_space<vmem>>, vector<1x1x1xf32>
    %48 = vector.shape_cast %47 : vector<1x1x1xf32> to vector<1x1xf32>
    %49 = vector.shape_cast %46 : vector<1x1xf32> to vector<1x1x1xf32>
    tpu.vector_store %arg5[%c0_23, %c0_24, %c0_25], %49 {strides = array<i32>} : memref<1x1x1xf32, #tpu.memory_space<vmem>>, vector<1x1x1xf32>,
    %50 = tpu.iota {dimensions = array<i32: 1>} : vector<1x16xi32>
    %51 = vector.extract_strided_slice %16 {offsets = [0, 0], sizes = [32, 1], strides = [1, 1]} : vector<32x16xf32> to vector<32x1xf32>
    %52 = vector.extract_strided_slice %16 {offsets = [0, 0], sizes = [32, 15], strides = [1, 1]} : vector<32x16xf32> to vector<32x15xf32>
    %53 = tpu.concatenate %51, %52 in 1 : vector<32x1xf32>, vector<32x15xf32> -> vector<32x16xf32>
    %c0_i32_26 = arith.constant 0 : i32
    %54 = vector.broadcast %c0_i32_26 : i32 to vector<1x16xi32>
    %55 = arith.cmpi eq, %50, %54 : vector<1x16xi32>
    %c0_27 = arith.constant 0 : index
    %c0_28 = arith.constant 0 : index
    %56 = vector.load %arg7[%c0_27, %c0_28] : memref<32x1xf32, #tpu.memory_space<vmem>>, vector<32x1xf32>
    %57 = vector.shape_cast %55 : vector<1x16xi1> to vector<1x16xi1>
    %58 = vector.broadcast %57 : vector<1x16xi1> to vector<32x16xi1>
    %59 = vector.shape_cast %56 : vector<32x1xf32> to vector<32x1xf32>
    %60 = vector.broadcast %59 : vector<32x1xf32> to vector<32x16xf32>
    %61 = arith.select %58, %60, %53 : vector<32x16xi1>, vector<32x16xf32>
    %62 = arith.subf %16, %61 : vector<32x16xf32>
    %63 = arith.mulf %62, %62 : vector<32x16xf32>
    %cst_29 = arith.constant 1.600000e+02 : f32
    %64 = vector.broadcast %cst_29 : f32 to vector<32x16xf32>
    %65 = arith.minimumf %63, %64 : vector<32x16xf32>
    %c16_i32 = arith.constant 16 : i32
    %66 = arith.muli %arg1, %c16_i32 : i32
    %67 = vector.broadcast %66 : i32 to vector<1x16xi32>
    %68 = arith.addi %67, %50 : vector<1x16xi32>
    %c1_i32 = arith.constant 1 : i32
    %69 = vector.broadcast %c1_i32 : i32 to vector<1x16xi32>
    %70 = arith.cmpi sge, %68, %69 : vector<1x16xi32>
    %c16_i32_30 = arith.constant 16 : i32
    %71 = vector.broadcast %c16_i32_30 : i32 to vector<1x16xi32>
    %72 = arith.cmpi slt, %68, %71 : vector<1x16xi32>
    %73 = arith.andi %70, %72 : vector<1x16xi1>
    %c0_31 = arith.constant 0 : index
    %c0_32 = arith.constant 0 : index
    %c0_33 = arith.constant 0 : index
    %74 = vector.load %arg6[%c0_31, %c0_32, %c0_33] : memref<1x1x1xf32, #tpu.memory_space<vmem>>, vector<1x1x1xf32>
    %75 = vector.shape_cast %74 : vector<1x1x1xf32> to vector<1x1xf32>
    %cst_34 = arith.constant 0.000000e+00 : f32
    %76 = vector.shape_cast %73 : vector<1x16xi1> to vector<1x16xi1>
    %77 = vector.broadcast %76 : vector<1x16xi1> to vector<32x16xi1>
    %78 = vector.broadcast %cst_34 : f32 to vector<32x16xf32>
    %79 = arith.select %77, %65, %78 : vector<32x16xi1>, vector<32x16xf32>
    %80 = vector.shape_cast %79 : vector<32x16xf32> to vector<1x32x16xf32>
    %cst_35 = arith.constant dense<0.000000e+00> : vector<1xf32>
    %81 = vector.multi_reduction <add>, %80, %cst_35 [1, 2] : vector<1x32x16xf32> to vector<1xf32>
    %82 = vector.shape_cast %81 : vector<1xf32> to vector<1x1x1xf32>
    %83 = vector.extract %82[0, 0, 0] : f32 from vector<1x1x1xf32>
    %84 = vector.broadcast %83 : f32 to vector<1x1xf32>
    %85 = arith.addf %75, %84 : vector<1x1xf32>
    %c0_36 = arith.constant 0 : index
    %c0_37 = arith.constant 0 : index
    %c0_38 = arith.constant 0 : index
    %86 = vector.load %arg6[%c0_36, %c0_37, %c0_38] : memref<1x1x1xf32, #tpu.memory_space<vmem>>, vector<1x1x1xf32>
    %87 = vector.shape_cast %86 : vector<1x1x1xf32> to vector<1x1xf32>
    %88 = vector.shape_cast %85 : vector<1x1xf32> to vector<1x1x1xf32>
    tpu.vector_store %arg6[%c0_36, %c0_37, %c0_38], %88 {strides = array<i32>} : memref<1x1x1xf32, #tpu.memory_space<vmem>>, vector<1x1x1xf32>,
    %89 = vector.extract_strided_slice %16 {offsets = [0, 15], sizes = [32, 1], strides = [1, 1]} : vector<32x16xf32> to vector<32x1xf32>
    %c0_39 = arith.constant 0 : index
    %c0_40 = arith.constant 0 : index
    %90 = vector.load %arg7[%c0_39, %c0_40] : memref<32x1xf32, #tpu.memory_space<vmem>>, vector<32x1xf32>
    tpu.vector_store %arg7[%c0_39, %c0_40], %89 {strides = array<i32>} : memref<32x1xf32, #tpu.memory_space<vmem>>, vector<32x1xf32>,
    return
  }
  func.func @transform_0(%arg0: i32, %arg1: i32) -> (i32, i32, i32) {
    %c0_i32 = arith.constant 0 : i32
    %c0_i32_0 = arith.constant 0 : i32
    return %arg0, %c0_i32, %arg1 : i32, i32, i32
  }
  func.func @transform_1(%arg0: i32, %arg1: i32) -> (i32, i32, i32) {
    %c0_i32 = arith.constant 0 : i32
    %c0_i32_0 = arith.constant 0 : i32
    return %arg0, %c0_i32, %arg1 : i32, i32, i32
  }
  func.func @transform_2(%arg0: i32, %arg1: i32) -> (i32, i32, i32) {
    %c0_i32 = arith.constant 0 : i32
    %c0_i32_0 = arith.constant 0 : i32
    %c0_i32_1 = arith.constant 0 : i32
    return %arg0, %c0_i32, %c0_i32_0 : i32, i32, i32
  }
  func.func @transform_3(%arg0: i32, %arg1: i32) -> (i32, i32, i32) {
    %c0_i32 = arith.constant 0 : i32
    %c0_i32_0 = arith.constant 0 : i32
    %c0_i32_1 = arith.constant 0 : i32
    return %arg0, %c0_i32, %c0_i32_0 : i32, i32, i32
  }
  func.func @transform_4(%arg0: i32, %arg1: i32) -> (i32, i32, i32) {
    %c0_i32 = arith.constant 0 : i32
    %c0_i32_0 = arith.constant 0 : i32
    %c0_i32_1 = arith.constant 0 : i32
    return %arg0, %c0_i32, %c0_i32_0 : i32, i32, i32
  }
}

</mosaic_0001>

<llo_original>
// kernel: tpu_custom_call.1
$region0: #{tpu_custom_call.1}
  #allocation0 [shape = 'u32[]', space=smem, size = 0x4, offset = 0x4, fixed_abs, tag = 'smem constant byte address 0x4 - core index']
  #allocation1 [shape = 'u32[72,128]{1,0:T(1,128)}', space=vmem, size = 0x9000, scoped, tag = 'internal scratch']
  #allocation2 [shape = 'f32[32,1]{1,0:T(8,128)}', space=vmem, size = 0x4000, scoped, tag = 'scratch operand']
  %s0 = inlined_call_operand.vmem [shape: f32[2,32,16], index: 0, kind: input, shape index: {}]
  %s1 = inlined_call_operand.vmem [shape: s32[2,1,16], index: 1, kind: input, shape index: {}]
  %s2 = inlined_call_operand.vmem [shape: f32[2,1,1], index: 2, kind: output, shape index: {0}]
  %s3 = inlined_call_operand.vmem [shape: f32[2,1,1], index: 3, kind: output, shape index: {1}]
  %s4 = inlined_call_operand.vmem [shape: f32[2,1,1], index: 4, kind: output, shape index: {2}]
  %5 = xla_tuple %s2, %s3, %s4
  %s6 = sld [smem:[#allocation0]]
  $region61: #{tpu_custom_call.1} parent=0
    _
  %s8 = ssub.s32 1, %s6
  %s9 = scalar_select 0, %s8, %s6
  loop: start=0, step=1, limit=4
  $region2: #{tpu_custom_call.1} parent=0 // loop_pre_header
    _
  $region3: #{tpu_custom_call.1} parent=0 // loop_header
    %s11 = sphi 0, %s15
    %p12 = scmp.ge.s32.totalorder %s11, 4
    %s18 = sphi 0, %s30
    %s19 = sphi 0, %s26
    %s20 = sphi 0, %s18
    %s21 = sphi 0, %s19
    %s22 = sphi 0, %s20
    %s23 = sphi 0, %s21
    %s35 = sphi 0, %s37
    %s38 = sphi 0, %s35
    %s39 = sphi 0, %s38
    %s55 = sphi 0, %s39
    %s63 = sphi 0, %s65
    %s66 = sphi 0, %s63
    %s67 = sphi 0, %s66
    %s83 = sphi 0, %s67
    %s89 = sphi 0, %s91
    %s92 = sphi 0, %s89
    %s93 = sphi 0, %s92
    %s109 = sphi 0, %s93
    %s115 = sphi 0, %s117
    %s118 = sphi 0, %s115
    %s119 = sphi 0, %s118
    %s135 = sphi 0, %s119
    %s141 = sphi 0, %s143
    %s144 = sphi 0, %s141
    %s145 = sphi 0, %s144
    %s161 = sphi 0, %s145
  $region4: #{tpu_custom_call.1} parent=0 // loop_header_branch
    %14 = sbr.rel (%p12) target = $region8
  $region5: #{tpu_custom_call.1} parent=0 // loop_body
    %s16 = ssub.s32 %s11, 1
    %s17 = ssub.s32 %s11, 2
    %s24 = sadd.s32 1, %s19
    %p25 = scmp.ge.s32.totalorder %s24, 1
    %s26 = scalar_select %p25, 0, %s24
    %s27 = sadd.s32 1, %s18
    %s28 = scalar_select %p25, %s27, %s18
    %p29 = scmp.ge.s32.totalorder %s28, 2
    %s30 = scalar_select %p29, 0, %s28
    %s31 = ssub.s32 %s18, %s30
    %s32 = ssub.s32 %s19, %s26
    %s33 = sor.u32 %s31, %s32
    %p34 = scmp.eq.s32.totalorder %s33, 0
    %s36 = sadd.s32 %s35, 1
    %s37 = scalar_select %p34, %s35, %s36
    %p40 = pneg %p34
    %p41 = scmp.eq.s32.totalorder %s11, 1
    %p42 = por %p40, %p41
    %p43 = scmp.ne.s32.totalorder %s35, %s38
    %p44 = scmp.eq.s32.totalorder %s11, 0
    %p45 = por %p43, %p44
    %p46 = scmp.ne.s32.totalorder %s35, %s38
    %p47 = scmp.eq.s32.totalorder %s16, 1
    %p48 = por %p46, %p47
    %p49 = scmp.ne.s32.totalorder %s38, %s39
    %p50 = scmp.eq.s32.totalorder %s16, 0
    %p51 = por %p49, %p50
    %p52 = scmp.ne.s32.totalorder %s38, %s39
    %p53 = scmp.eq.s32.totalorder %s17, 1
    %p54 = por %p52, %p53
    %p56 = scmp.ne.s32.totalorder %s39, %s55
    %p57 = scmp.eq.s32.totalorder %s17, 0
    %p58 = por %p56, %p57
    %s59 = ssub.s32 %s18, %s30
    %s60 = ssub.s32 %s19, %s26
    %s61 = sor.u32 %s59, %s60
    %p62 = scmp.eq.s32.totalorder %s61, 0
    %s64 = sadd.s32 %s63, 1
    %s65 = scalar_select %p62, %s63, %s64
    %p68 = pneg %p62
    %p69 = scmp.eq.s32.totalorder %s11, 1
    %p70 = por %p68, %p69
    %p71 = scmp.ne.s32.totalorder %s63, %s66
    %p72 = scmp.eq.s32.totalorder %s11, 0
    %p73 = por %p71, %p72
    %p74 = scmp.ne.s32.totalorder %s63, %s66
    %p75 = scmp.eq.s32.totalorder %s16, 1
    %p76 = por %p74, %p75
    %p77 = scmp.ne.s32.totalorder %s66, %s67
    %p78 = scmp.eq.s32.totalorder %s16, 0
    %p79 = por %p77, %p78
    %p80 = scmp.ne.s32.totalorder %s66, %s67
    %p81 = scmp.eq.s32.totalorder %s17, 1
    %p82 = por %p80, %p81
    %p84 = scmp.ne.s32.totalorder %s67, %s83
    %p85 = scmp.eq.s32.totalorder %s17, 0
    %p86 = por %p84, %p85
    %s87 = ssub.s32 %s18, %s30
    %p88 = scmp.eq.s32.totalorder %s87, 0
    %s90 = sadd.s32 %s89, 1
    %s91 = scalar_select %p88, %s89, %s90
    %p94 = pneg %p88
    %p95 = scmp.eq.s32.totalorder %s11, 1
    %p96 = por %p94, %p95
    %p97 = scmp.ne.s32.totalorder %s89, %s92
    %p98 = scmp.eq.s32.totalorder %s11, 0
    %p99 = por %p97, %p98
    %p100 = scmp.ne.s32.totalorder %s89, %s92
    %p101 = scmp.eq.s32.totalorder %s16, 1
    %p102 = por %p100, %p101
    %p103 = scmp.ne.s32.totalorder %s92, %s93
    %p104 = scmp.eq.s32.totalorder %s16, 0
    %p105 = por %p103, %p104
    %p106 = scmp.ne.s32.totalorder %s92, %s93
    %p107 = scmp.eq.s32.totalorder %s17, 1
    %p108 = por %p106, %p107
    %p110 = scmp.ne.s32.totalorder %s93, %s109
    %p111 = scmp.eq.s32.totalorder %s17, 0
    %p112 = por %p110, %p111
    %s113 = ssub.s32 %s18, %s30
    %p114 = scmp.eq.s32.totalorder %s113, 0
    %s116 = sadd.s32 %s115, 1
    %s117 = scalar_select %p114, %s115, %s116
    %p120 = pneg %p114
    %p121 = scmp.eq.s32.totalorder %s11, 1
    %p122 = por %p120, %p121
    %p123 = scmp.ne.s32.totalorder %s115, %s118
    %p124 = scmp.eq.s32.totalorder %s11, 0
    %p125 = por %p123, %p124
    %p126 = scmp.ne.s32.totalorder %s115, %s118
    %p127 = scmp.eq.s32.totalorder %s16, 1
    %p128 = por %p126, %p127
    %p129 = scmp.ne.s32.totalorder %s118, %s119
    %p130 = scmp.eq.s32.totalorder %s16, 0
    %p131 = por %p129, %p130
    %p132 = scmp.ne.s32.totalorder %s118, %s119
    %p133 = scmp.eq.s32.totalorder %s17, 1
    %p134 = por %p132, %p133
    %p136 = scmp.ne.s32.totalorder %s119, %s135
    %p137 = scmp.eq.s32.totalorder %s17, 0
    %p138 = por %p136, %p137
    %s139 = ssub.s32 %s18, %s30
    %p140 = scmp.eq.s32.totalorder %s139, 0
    %s142 = sadd.s32 %s141, 1
    %s143 = scalar_select %p140, %s141, %s142
    %p146 = pneg %p140
    %p147 = scmp.eq.s32.totalorder %s11, 1
    %p148 = por %p146, %p147
    %p149 = scmp.ne.s32.totalorder %s141, %s144
    %p150 = scmp.eq.s32.totalorder %s11, 0
    %p151 = por %p149, %p150
    %p152 = scmp.ne.s32.totalorder %s141, %s144
    %p153 = scmp.eq.s32.totalorder %s16, 1
    %p154 = por %p152, %p153
    %p155 = scmp.ne.s32.totalorder %s144, %s145
    %p156 = scmp.eq.s32.totalorder %s16, 0
    %p157 = por %p155, %p156
    %p158 = scmp.ne.s32.totalorder %s144, %s145
    %p159 = scmp.eq.s32.totalorder %s17, 1
    %p160 = por %p158, %p159
    %p162 = scmp.ne.s32.totalorder %s145, %s161
    %p163 = scmp.eq.s32.totalorder %s17, 0
    %p164 = por %p162, %p163
    %p165 = scmp.le.s32.totalorder 1, %s11
    %p166 = scmp.lt.s32.totalorder %s11, 3
    %p167 = pnand %p165, %p166
    %p168 = pneg %p167
    // Predicated region
    $region9: #{tpu_custom_call.1} parent=5 // pred_check
      _
    $region10: #{tpu_custom_call.1} parent=5 // pred_check_branch
      %170 = sbr.rel (%p167) target = $region12
    $region11: #{tpu_custom_call.1} parent=5 // pred_region
      %s171 = ssub.s32 %s11, 1
    $region12: #{tpu_custom_call.1} parent=5 // pred_fallthru
      _
    %p172 = scmp.lt.s32.totalorder %s11, 2
    // Predicated region
    $region13: #{tpu_custom_call.1} parent=5 // pred_check
      %p173 = pneg %p172
    $region14: #{tpu_custom_call.1} parent=5 // pred_check_branch
      %175 = sbr.rel (%p173) target = $region16
    $region15: #{tpu_custom_call.1} parent=5 // pred_region
      // Predicated region
      $region17: #{tpu_custom_call.1} parent=15 // pred_check
        %p176 = pneg %p45
      $region18: #{tpu_custom_call.1} parent=15 // pred_check_branch
        %178 = sbr.rel (%p176) target = $region20
      $region19: #{tpu_custom_call.1} parent=15 // pred_region
        %p179 = scmp.lt.s32.totalorder %s18, 1
        %s180 = scalar_select %p179, %s18, 1
        %p181 = scmp.lt.s32.totalorder %s19, 0
        %s182 = scalar_select %p181, %s19, 0
        %s183 = smul.addr %s180, 4
        %s184 = sadd.s32 %s182, %s183
        %s185 = smul.addr %s184, 8
        %s186 = scalar_lea.vmem %s0, %s185
      $region20: #{tpu_custom_call.1} parent=15 // pred_fallthru
        _
      // Predicated region
      $region21: #{tpu_custom_call.1} parent=15 // pred_check
        %p187 = pneg %p73
      $region22: #{tpu_custom_call.1} parent=15 // pred_check_branch
        %189 = sbr.rel (%p187) target = $region24
      $region23: #{tpu_custom_call.1} parent=15 // pred_region
        %p190 = scmp.lt.s32.totalorder %s18, 1
        %s191 = scalar_select %p190, %s18, 1
        %p192 = scmp.lt.s32.totalorder %s19, 0
        %s193 = scalar_select %p192, %s19, 0
        %s194 = sadd.s32 %s193, %s191
        %s195 = scalar_lea.vmem %s1, %s194
      $region24: #{tpu_custom_call.1} parent=15 // pred_fallthru
        _
    $region16: #{tpu_custom_call.1} parent=5 // pred_fallthru
      _
    %p196 = scmp.le.s32.totalorder 1, %s11
    %p197 = scmp.lt.s32.totalorder %s11, 3
    %p198 = pnand %p196, %p197
    %p199 = pneg %p198
    // Predicated region
    $region25: #{tpu_custom_call.1} parent=5 // pred_check
      _
    $region26: #{tpu_custom_call.1} parent=5 // pred_check_branch
      %201 = sbr.rel (%p198) target = $region28
    $region27: #{tpu_custom_call.1} parent=5 // pred_region
      %s202 = ssub.s32 %s11, 1
      %p203 = scmp.lt.s32.totalorder %s20, 1
      %s204 = scalar_select %p203, %s20, 1
      %p205 = scmp.lt.s32.totalorder %s21, 0
      %s206 = scalar_select %p205, %s21, 0
      %s207 = smul.addr %s204, 4
      %s208 = sadd.s32 %s206, %s207
      %s209 = smul.addr %s208, 8
      %s210 = scalar_lea.vmem %s0, %s209
      %p211 = pneg %p51
      %p212 = pneg %p48
      %p213 = scmp.lt.s32.totalorder %s20, 1
      %s214 = scalar_select %p213, %s20, 1
      %p215 = scmp.lt.s32.totalorder %s21, 0
      %s216 = scalar_select %p215, %s21, 0
      %s217 = sadd.s32 %s216, %s214
      %s218 = scalar_lea.vmem %s1, %s217
      %p219 = pneg %p79
      %p220 = pneg %p76
      %p221 = pneg %p105
      %p222 = pneg %p102
      %p223 = scmp.lt.s32.totalorder %s20, 1
      %s224 = scalar_select %p223, %s20, 1
      %s225 = scalar_lea.vmem %s2, %s224
      %p226 = pneg %p131
      %p227 = pneg %p128
      %p228 = scmp.lt.s32.totalorder %s20, 1
      %s229 = scalar_select %p228, %s20, 1
      %s230 = scalar_lea.vmem %s3, %s229
      %p231 = pneg %p157
      %p232 = pneg %p154
      %p233 = scmp.lt.s32.totalorder %s20, 1
      %s234 = scalar_select %p233, %s20, 1
      %s235 = scalar_lea.vmem %s4, %s234
      %p236 = scmp.lt.s32.totalorder %s20, 1
      %s237 = scalar_select %p236, %s20, 1
      %p238 = scmp.lt.s32.totalorder %s21, 0
      %s239 = scalar_select %p238, %s21, 0
      %s240 = smul.addr %s237, 4
      %s241 = sadd.s32 %s239, %s240
      %s242 = smul.addr %s241, 8
      %s243 = scalar_lea.vmem %s0, %s242
      %p244 = scmp.lt.s32.totalorder %s20, 1
      %s245 = scalar_select %p244, %s20, 1
      %p246 = scmp.lt.s32.totalorder %s21, 0
      %s247 = scalar_select %p246, %s21, 0
      %s248 = sadd.s32 %s247, %s245
      %s249 = scalar_lea.vmem %s1, %s248
      %p250 = scmp.lt.s32.totalorder %s20, 1
      %s251 = scalar_select %p250, %s20, 1
      %s252 = scalar_lea.vmem %s2, %s251
      %p253 = scmp.lt.s32.totalorder %s20, 1
      %s254 = scalar_select %p253, %s20, 1
      %s255 = scalar_lea.vmem %s3, %s254
      %p256 = scmp.lt.s32.totalorder %s20, 1
      %s257 = scalar_select %p256, %s20, 1
      %s258 = scalar_lea.vmem %s4, %s257
      %p259 = scmp.eq.s32.totalorder %s21, 0
      // Predicated region
      $region29: #{tpu_custom_call.1} parent=27 // pred_check
        %p260 = pneg %p259
      $region30: #{tpu_custom_call.1} parent=27 // pred_check_branch
        %262 = sbr.rel (%p260) target = $region32
      $region31: #{tpu_custom_call.1} parent=27 // pred_region
        %vm263 = vcmask 0
        %264 = vst.msk [vmem:[%s252] sm:$0x1] %vm263, 0.0
        %265 = vst.msk [vmem:[%s255] sm:$0x1] %vm263, 0.0
        %266 = vst.msk [vmem:[%s258] sm:$0x1] %vm263, 0.0
        %vm267 = vcmask 7168
        %268 = vst.msk [vmem:[#allocation2] sm:$0xff] %vm267, 0.0
        %269 = vst.msk [vmem:[#allocation2 + $0x8] sm:$0xff] %vm267, 0.0
        %270 = vst.msk [vmem:[#allocation2 + $0x10] sm:$0xff] %vm267, 0.0
        %271 = vst.msk [vmem:[#allocation2 + $0x18] sm:$0xff] %vm267, 0.0
      $region32: #{tpu_custom_call.1} parent=27 // pred_fallthru
        _
      %v272 = vld [vmem:[%s243] sm:$0xff]
      %v273 = vld [vmem:[%s243 + $0x8] sm:$0xff]
      %v274 = vld [vmem:[%s243 + $0x10] sm:$0xff]
      %v275 = vld [vmem:[%s243 + $0x18] sm:$0xff]
      %v276 = vld [vmem:[%s249] sm:$0x1]
      %vm277 = vcmask 130048
      %v278 = vsel %vm277, %v272, -inf
      %v279 = vsel %vm277, %v273, -inf
      %v280 = vsel %vm277, %v274, -inf
      %v281 = vsel %vm277, %v275, -inf
      %v282 = vmax.f32 %v278, %v279
      %v283 = vmax.f32 %v280, %v281
      %v284 = vmax.f32 %v282, %v283
      %v285 = vrot.slane %v284, 4
      %v286 = vmax.f32 %v284, %v285
      %v287 = vrot.slane %v286, 2
      %v288 = vmax.f32 %v286, %v287
      %v289 = vrot.slane %v288, 1
      %v290 = vmax.f32 %v288, %v289
      %v291 = vsub.f32 %v272, %v290
      %v292 = vsub.f32 %v273, %v290
      %v293 = vsub.f32 %v274, %v290
      %v294 = vsub.f32 %v275, %v290
      %v295 = vmul.f32 %v291, 1.442695
      %v296 = vpow.pop %v295
      %v297 = vmul.f32 %v292, 1.442695
      %v298 = vpow.pop %v297
      %v299 = vmul.f32 %v293, 1.442695
      %v300 = vpow.pop %v299
      %v301 = vmul.f32 %v294, 1.442695
      %v302 = vpow.pop %v301
      %v303 = vsel %vm277, %v296, 0.0
      %v304 = vsel %vm277, %v298, 0.0
      %v305 = vadd.f32 %v303, %v304
      %v306 = vsel %vm277, %v300, 0.0
      %v307 = vadd.f32 %v305, %v306
      %v308 = vsel %vm277, %v302, 0.0
      %v309 = vadd.f32 %v307, %v308
      %v310 = vrot.slane %v309, 4
      %v311 = vadd.f32 %v309, %v310
      %v312 = vrot.slane %v311, 2
      %v313 = vadd.f32 %v311, %v312
      %v314 = vrot.slane %v313, 1
      %v315 = vadd.f32 %v313, %v314
      %v316 = vlog2.pop %v315
      %v317 = vmul.f32 %v316, 0.6931472
      %v318 = vsub.f32 %v291, %v317
      %v319 = vsub.f32 %v292, %v317
      %v320 = vsub.f32 %v293, %v317
      %v321 = vsub.f32 %v294, %v317
      %vm322 = vcmp.ne.s32.totalorder %v276, 4294967196
      %v323 = vsel %vm322, %v276, 0
      %v324 = vlaneseq
      %v325 = vshrl.u32 %v324, 7
      %v326 = vadd.s32 %v325, 8
      %v327 = vadd.s32 %v325, 16
      %v328 = vadd.s32 %v325, 24
      %v329 = vperm.slane %v323, 0
      %vm330 = vcmp.eq.s32.totalorder %v325, %v329
      %vm331 = vcmp.eq.s32.totalorder %v326, %v329
      %vm332 = vcmp.eq.s32.totalorder %v327, %v329
      %vm333 = vcmp.eq.s32.totalorder %v328, %v329
      %v334 = vsel %vm330, %v318, 0.0
      %v335 = vsel %vm331, %v319, 0.0
      %v336 = vsel %vm332, %v320, 0.0
      %v337 = vsel %vm333, %v321, 0.0
      %v338 = vsel %vm277, %v334, 0.0
      %v339 = vsel %vm277, %v335, 0.0
      %v340 = vadd.f32 %v338, %v339
      %v341 = vsel %vm277, %v336, 0.0
      %v342 = vadd.f32 %v340, %v341
      %v343 = vsel %vm277, %v337, 0.0
      %v344 = vadd.f32 %v342, %v343
      %v345 = vrot.slane %v344, 4
      %v346 = vadd.f32 %v344, %v345
      %v347 = vrot.slane %v346, 2
      %v348 = vadd.f32 %v346, %v347
      %v349 = vrot.slane %v348, 1
      %v350 = vadd.f32 %v348, %v349
      %v351 = vld [vmem:[%s252] sm:$0x1]
      %v352 = vsub.f32 0.0, %v350
      %v353 = vsel %vm322, %v352, 0.0
      %vm354 = vcmask 122880
      %v355 = vsel %vm354, %v353, 0.0
      %356 = vadd.xlane.f32.xlu0 %v355
      %v357 = vpop.xlane.xlu0 %356
      %v358 = vadd.f32 %v351, %v357
      %vm359 = vcmask 0
      %360 = vst.msk [vmem:[%s252] sm:$0x1] %vm359, %v358
      %v361 = vld [vmem:[%s255] sm:$0x1]
      %v362 = vsel %vm322, 1, 0
      %v363 = vcvt.s32.f32 %v362
      %v364 = vsel %vm354, %v363, 0.0
      %365 = vadd.xlane.f32.xlu0 %v364
      %v366 = vpop.xlane.xlu0 %365
      %v367 = vadd.f32 %v361, %v366
      %368 = vst.msk [vmem:[%s255] sm:$0x1] %vm359, %v367
      %v369 = vlaneseq
      %v370 = vand.u32 %v369, 127
      %375 = vrot.lane.b32.xlu0 %v318, 1
      %v376 = vpop.permute.xlu0 %375
      %377 = vrot.lane.b32.xlu0 %v319, 1
      %v378 = vpop.permute.xlu0 %377
      %379 = vrot.lane.b32.xlu0 %v320, 1
      %v380 = vpop.permute.xlu0 %379
      %381 = vrot.lane.b32.xlu0 %v321, 1
      %v382 = vpop.permute.xlu0 %381
      %vm387 = vcmask 7168
      %v388 = vsel %vm387, %v318, %v376
      %v389 = vsel %vm387, %v319, %v378
      %v390 = vsel %vm387, %v320, %v380
      %v391 = vsel %vm387, %v321, %v382
      %vm392 = vcmp.eq.s32.totalorder %v370, 0
      %v393 = vld [vmem:[#allocation2] sm:$0xff]
      %v394 = vld [vmem:[#allocation2 + $0x8] sm:$0xff]
      %v395 = vld [vmem:[#allocation2 + $0x10] sm:$0xff]
      %v396 = vld [vmem:[#allocation2 + $0x18] sm:$0xff]
      %v397 = vsel %vm392, 1, 0
      %vm398 = vcmp.eq.s32.totalorder %v397, 1
      %400 = vset.pattern.permute.xlu0 0
      %401 = vperm.xlu0 %400, %v393
      %v402 = vpop.permute.xlu0 %401
      %405 = vset.pattern.permute.xlu0 0
      %406 = vperm.xlu0 %405, %v394
      %v407 = vpop.permute.xlu0 %406
      %410 = vset.pattern.permute.xlu0 0
      %411 = vperm.xlu0 %410, %v395
      %v412 = vpop.permute.xlu0 %411
      %415 = vset.pattern.permute.xlu0 0
      %416 = vperm.xlu0 %415, %v396
      %v417 = vpop.permute.xlu0 %416
      %v419 = vsel %vm398, %v402, %v388
      %v420 = vsel %vm398, %v407, %v389
      %v421 = vsel %vm398, %v412, %v390
      %v422 = vsel %vm398, %v417, %v391
      %v423 = vsub.f32 %v318, %v419
      %v424 = vsub.f32 %v319, %v420
      %v425 = vsub.f32 %v320, %v421
      %v426 = vsub.f32 %v321, %v422
      %v427 = vmul.f32 %v423, %v423
      %v428 = vmul.f32 %v424, %v424
      %v429 = vmul.f32 %v425, %v425
      %v430 = vmul.f32 %v426, %v426
      %v431 = vmin.f32 %v427, 160.0
      %v432 = vmin.f32 %v428, 160.0
      %v433 = vmin.f32 %v429, 160.0
      %v434 = vmin.f32 %v430, 160.0
      %s435 = smul.u32 %s21, 16
      %v436 = vstv %s435
      %v437 = vadd.s32 %v436, %v370
      %vm438 = vcmp.ge.s32.totalorder %v437, 1
      %vm439 = vcmp.lt.s32.totalorder %v437, 16
      %vm440 = vmand %vm438, %vm439
      %v441 = vld [vmem:[%s258] sm:$0x1]
      %v442 = vsel %vm440, 1, 0
      %vm443 = vcmp.eq.s32.totalorder %v442, 1
      %v444 = vsel %vm443, %v431, 0.0
      %v445 = vsel %vm443, %v432, 0.0
      %v446 = vsel %vm443, %v433, 0.0
      %v447 = vsel %vm443, %v434, 0.0
      %v448 = vsel %vm277, %v444, 0.0
      %v449 = vsel %vm277, %v445, 0.0
      %v450 = vadd.f32 %v448, %v449
      %v451 = vsel %vm277, %v446, 0.0
      %v452 = vadd.f32 %v450, %v451
      %v453 = vsel %vm277, %v447, 0.0
      %v454 = vadd.f32 %v452, %v453
      %455 = vadd.xlane.f32.xlu0 %v454
      %v456 = vpop.xlane.xlu0 %455
      %v457 = vrot.slane %v456, 4
      %v458 = vadd.f32 %v456, %v457
      %v459 = vrot.slane %v458, 2
      %v460 = vadd.f32 %v458, %v459
      %v461 = vrot.slane %v460, 1
      %v462 = vadd.f32 %v460, %v461
      %s463 = vtos %v462
      %v464 = vstv %s463
      %v465 = vadd.f32 %v441, %v464
      %466 = vst.msk [vmem:[%s258] sm:$0x1] %vm359, %v465
      %467 = vrot.lane.b32.xlu0 %v318, 113
      %v468 = vpop.permute.xlu0 %467
      %469 = vrot.lane.b32.xlu0 %v319, 113
      %v470 = vpop.permute.xlu0 %469
      %471 = vrot.lane.b32.xlu0 %v320, 113
      %v472 = vpop.permute.xlu0 %471
      %473 = vrot.lane.b32.xlu0 %v321, 113
      %v474 = vpop.permute.xlu0 %473
      %479 = vst.msk [vmem:[#allocation2] sm:$0xff] %vm387, %v468
      %480 = vst.msk [vmem:[#allocation2 + $0x8] sm:$0xff] %vm387, %v470
      %481 = vst.msk [vmem:[#allocation2 + $0x10] sm:$0xff] %vm387, %v472
      %482 = vst.msk [vmem:[#allocation2 + $0x18] sm:$0xff] %vm387, %v474
      %p483 = scmp.lt.s32.totalorder %s20, 1
      %s484 = scalar_select %p483, %s20, 1
      %s485 = scalar_lea.vmem %s2, %s484
      %p486 = scmp.lt.s32.totalorder %s20, 1
      %s487 = scalar_select %p486, %s20, 1
      %s488 = scalar_lea.vmem %s3, %s487
      %p489 = scmp.lt.s32.totalorder %s20, 1
      %s490 = scalar_select %p489, %s20, 1
      %s491 = scalar_lea.vmem %s4, %s490
      // Predicated region
      $region33: #{tpu_custom_call.1} parent=27 // pred_check
        %p492 = pneg %p102
      $region34: #{tpu_custom_call.1} parent=27 // pred_check_branch
        %494 = sbr.rel (%p492) target = $region36
      $region35: #{tpu_custom_call.1} parent=27 // pred_region
        _
      $region36: #{tpu_custom_call.1} parent=27 // pred_fallthru
        _
      // Predicated region
      $region37: #{tpu_custom_call.1} parent=27 // pred_check
        %p495 = pneg %p128
      $region38: #{tpu_custom_call.1} parent=27 // pred_check_branch
        %497 = sbr.rel (%p495) target = $region40
      $region39: #{tpu_custom_call.1} parent=27 // pred_region
        _
      $region40: #{tpu_custom_call.1} parent=27 // pred_fallthru
        _
      // Predicated region
      $region41: #{tpu_custom_call.1} parent=27 // pred_check
        %p498 = pneg %p154
      $region42: #{tpu_custom_call.1} parent=27 // pred_check_branch
        %500 = sbr.rel (%p498) target = $region44
      $region43: #{tpu_custom_call.1} parent=27 // pred_region
        _
      $region44: #{tpu_custom_call.1} parent=27 // pred_fallthru
        _
    $region28: #{tpu_custom_call.1} parent=5 // pred_fallthru
      _
    %p501 = scmp.le.s32.totalorder 2, %s11
    // Predicated region
    $region45: #{tpu_custom_call.1} parent=5 // pred_check
      %p502 = pneg %p501
    $region46: #{tpu_custom_call.1} parent=5 // pred_check_branch
      %504 = sbr.rel (%p502) target = $region48
    $region47: #{tpu_custom_call.1} parent=5 // pred_region
      %s505 = ssub.s32 %s11, 2
      // Predicated region
      $region49: #{tpu_custom_call.1} parent=47 // pred_check
        %p506 = pneg %p108
      $region50: #{tpu_custom_call.1} parent=47 // pred_check_branch
        %508 = sbr.rel (%p506) target = $region52
      $region51: #{tpu_custom_call.1} parent=47 // pred_region
        %p509 = scmp.lt.s32.totalorder %s22, 1
        %s510 = scalar_select %p509, %s22, 1
        %s511 = scalar_lea.vmem %s2, %s510
      $region52: #{tpu_custom_call.1} parent=47 // pred_fallthru
        _
      // Predicated region
      $region53: #{tpu_custom_call.1} parent=47 // pred_check
        %p512 = pneg %p134
      $region54: #{tpu_custom_call.1} parent=47 // pred_check_branch
        %514 = sbr.rel (%p512) target = $region56
      $region55: #{tpu_custom_call.1} parent=47 // pred_region
        %p515 = scmp.lt.s32.totalorder %s22, 1
        %s516 = scalar_select %p515, %s22, 1
        %s517 = scalar_lea.vmem %s3, %s516
      $region56: #{tpu_custom_call.1} parent=47 // pred_fallthru
        _
      // Predicated region
      $region57: #{tpu_custom_call.1} parent=47 // pred_check
        %p518 = pneg %p160
      $region58: #{tpu_custom_call.1} parent=47 // pred_check_branch
        %520 = sbr.rel (%p518) target = $region60
      $region59: #{tpu_custom_call.1} parent=47 // pred_region
        %p521 = scmp.lt.s32.totalorder %s22, 1
        %s522 = scalar_select %p521, %s22, 1
        %s523 = scalar_lea.vmem %s4, %s522
      $region60: #{tpu_custom_call.1} parent=47 // pred_fallthru
        _
    $region48: #{tpu_custom_call.1} parent=5 // pred_fallthru
      _
  $region6: #{tpu_custom_call.1} parent=0 // loop_footer
    %s15 = sadd.s32 1, %s11
  $region7: #{tpu_custom_call.1} parent=0 // loop_footer_branch
    %10 = sbr.rel target = $region3
  $region8: #{tpu_custom_call.1} parent=0 // loop_exit
    _

</llo_original>
